<compile_context>
chip_gen: v7x
topology: tpu7x:2x2x1
jax: 0.10.0
libtpu: 0.0.40
codegen_flags: <defaults>
</compile_context>

<pallas_src>
import math
from functools import partial

import jax
import jax.numpy as jnp
from jax.experimental import pallas as pl
from jax.experimental.pallas import tpu as pltpu

_EPS = 1e-12                                   # torch F.normalize default eps
_NEG_MAX = float(-jnp.finfo(jnp.float32).max)  # mask_value in Attention


# ----------------------------- kernel helpers ------------------------------

def _rmsnorm(x, gamma, scale):
    # l2norm(x) * sqrt(dim) * (gamma + 1);  1/max(||x||,eps) == rsqrt(max(ss,eps^2))
    ss = jnp.sum(x * x, axis=-1, keepdims=True)
    inv = jax.lax.rsqrt(jnp.maximum(ss, _EPS * _EPS))
    return x * inv * scale * (gamma + 1.0)


def _gelu_exact(x):
    # F.gelu default (erf-based), f32
    return 0.5 * x * (1.0 + jax.lax.erf(x * (1.0 / math.sqrt(2.0))))


def _layer_compute(x, mask, g_attn, wqkv, wo, g_ff, w1, b1, w2, b2,
                   *, heads, dim_head, softcap):
    """x: (N, D) f32; mask: (N, N) bool; GEMM weights bf16, biases/gammas f32."""
    N, D = x.shape
    hd = heads * dim_head
    rms_scale = D ** 0.5
    score_scale = (dim_head ** -0.5) / softcap     # q-scale folded with 1/softcap

    # ------------------------------ Attention ------------------------------
    normed = _rmsnorm(x, g_attn, rms_scale)
    qkv = jnp.dot(normed.astype(jnp.bfloat16), wqkv,
                  preferred_element_type=jnp.float32)            # (N, 3*H*Dh)
    head_outs = []
    for h in range(heads):                                       # static unroll
        lo = h * dim_head
        q = qkv[:, lo:lo + dim_head].astype(jnp.bfloat16)
        k = qkv[:, hd + lo:hd + lo + dim_head].astype(jnp.bfloat16)
        v = qkv[:, 2 * hd + lo:2 * hd + lo + dim_head].astype(jnp.bfloat16)
        sim = jax.lax.dot_general(q, k, (((1,), (1,)), ((), ())),
                                  preferred_element_type=jnp.float32)   # (N, N)
        sim = jnp.tanh(sim * score_scale) * softcap                     # softclamp
        sim = jnp.where(mask, sim, _NEG_MAX)
        sim_max = jnp.max(sim, axis=-1, keepdims=True)
        p = jnp.exp(sim - sim_max)
        p = p * pl.reciprocal(jnp.sum(p, axis=-1, keepdims=True), approx=True)
        head_outs.append(jnp.dot(p.astype(jnp.bfloat16), v,
                                 preferred_element_type=jnp.float32))   # (N, Dh)
    merged = jnp.concatenate(head_outs, axis=-1)                        # (N, H*Dh)
    attn_out = jnp.dot(merged.astype(jnp.bfloat16), wo,
                       preferred_element_type=jnp.float32)              # (N, D)
    x = attn_out + x                                                    # residual

    # -------------------------- FeedForward (GEGLU) ------------------------
    inner = w2.shape[0]
    normed2 = _rmsnorm(x, g_ff, rms_scale)
    h12 = jnp.dot(normed2.astype(jnp.bfloat16), w1,
                  preferred_element_type=jnp.float32) + b1              # (N, 2*inner)
    hidden = _gelu_exact(h12[:, inner:]) * h12[:, :inner]               # gelu(gates)*x
    ff_out = jnp.dot(hidden.astype(jnp.bfloat16), w2,
                     preferred_element_type=jnp.float32) + b2
    return ff_out + x                                                   # residual


# ------------------------------ layer kernels -------------------------------

def _modal_layer_kernel(off_ref, len_ref, x_ref, g_attn_ref, wqkv_ref, wo_ref,
                        g_ff_ref, w1_ref, b1_ref, w2_ref, b2_ref, g_final_ref,
                        o_ref, *, heads, dim_head, softcap, num_modalities,
                        apply_final_norm):
    b = pl.program_id(0)
    x = x_ref[0].astype(jnp.float32)                  # (N, D)
    N = x.shape[0]
    # Build causal | modality mask in-kernel from SMEM scalars (no N^2 DMA).
    row = jax.lax.broadcasted_iota(jnp.int32, (N, N), 0)
    col = jax.lax.broadcasted_iota(jnp.int32, (N, N), 1)
    mask = row >= col
    for m in range(num_modalities):
        off = off_ref[b, m]
        ln = len_ref[b, m]
        mask = jnp.logical_or(mask, (row >= off) & (col < off + ln))
    x = _layer_compute(x, mask, g_attn_ref[...], wqkv_ref[...], wo_ref[...],
                       g_ff_ref[...], w1_ref[...], b1_ref[...], w2_ref[...],
                       b2_ref[...], heads=heads, dim_head=dim_head,
                       softcap=softcap)
    if apply_final_norm:
        x = _rmsnorm(x, g_final_ref[...], x.shape[-1] ** 0.5)
    o_ref[0] = x


def _mask_layer_kernel(mask_ref, x_ref, g_attn_ref, wqkv_ref, wo_ref, g_ff_ref,
                       w1_ref, b1_ref, w2_ref, b2_ref, g_final_ref, o_ref,
                       *, heads, dim_head, softcap, apply_final_norm):
    x = x_ref[0].astype(jnp.float32)
    mask = mask_ref[0] != 0                           # int8 mask tile
    x = _layer_compute(x, mask, g_attn_ref[...], wqkv_ref[...], wo_ref[...],
                       g_ff_ref[...], w1_ref[...], b1_ref[...], w2_ref[...],
                       b2_ref[...], heads=heads, dim_head=dim_head,
                       softcap=softcap)
    if apply_final_norm:
        x = _rmsnorm(x, g_final_ref[...], x.shape[-1] ** 0.5)
    o_ref[0] = x


def _final_norm_kernel(x_ref, gamma_ref, o_ref):      # only used when depth == 0
    x = x_ref[0].astype(jnp.float32)
    o_ref[0] = _rmsnorm(x, gamma_ref[...], x.shape[-1] ** 0.5)


# ----------------------------- wrappers (glue) ------------------------------

def _layer_call(x, lp, g_final, *, heads, dim_head, softcap, apply_final_norm,
                offsets=None, lengths=None, mask_i8=None):
    B, N, D = x.shape
    inner2 = lp["w1"].shape[1]
    inner = lp["w2"].shape[0]
    hd = heads * dim_head

    def wspec(shape):
        nd = len(shape)
        return pl.BlockSpec(shape, lambda b, *_: (0,) * nd)

    x_spec = pl.BlockSpec((1, N, D), lambda b, *_: (b, 0, 0))
    out_spec = pl.BlockSpec((1, N, D), lambda b, *_: (b, 0, 0))

    weight_specs = [wspec((1, D)),            # attn RMSNorm gamma
                    wspec((D, 3 * hd)),       # packed Wqkv (bf16)
                    wspec((hd, D)),           # Wout (bf16)
                    wspec((1, D)),            # ff RMSNorm gamma
                    wspec((D, inner2)),       # W1 packed value|gate (bf16)
                    wspec((1, inner2)),       # b1
                    wspec((inner, D)),        # W2 (bf16)
                    wspec((1, D)),            # b2
                    wspec((1, D))]            # final RMSNorm gamma
    weight_args = (lp["g_attn"], lp["wqkv"], lp["wo"], lp["g_ff"], lp["w1"],
                   lp["b1"], lp["w2"], lp["b2"], g_final)

    cp = pltpu.CompilerParams(dimension_semantics=("parallel",),
                              vmem_limit_bytes=32 * 1024 * 1024)
    out_shape = jax.ShapeDtypeStruct((B, N, D), jnp.float32)

    if offsets is not None:
        kernel = partial(_modal_layer_kernel, heads=heads, dim_head=dim_head,
                         softcap=softcap, num_modalities=offsets.shape[1],
                         apply_final_norm=apply_final_norm)
        gs = pltpu.PrefetchScalarGridSpec(
            num_scalar_prefetch=2, grid=(B,),
            in_specs=[x_spec] + weight_specs, out_specs=out_spec)
        return pl.pallas_call(kernel, out_shape=out_shape, grid_spec=gs,
                              compiler_params=cp)(offsets, lengths, x,
                                                  *weight_args)
    else:
        kernel = partial(_mask_layer_kernel, heads=heads, dim_head=dim_head,
                         softcap=softcap, apply_final_norm=apply_final_norm)
        gs = pltpu.PrefetchScalarGridSpec(
            num_scalar_prefetch=0, grid=(B,),
            in_specs=[pl.BlockSpec((1, N, N), lambda b: (b, 0, 0))] + [x_spec]
                     + weight_specs,
            out_specs=out_spec)
        return pl.pallas_call(kernel, out_shape=out_shape, grid_spec=gs,
                              compiler_params=cp)(mask_i8, x, *weight_args)


def _final_norm_call(x, gamma):
    B, N, D = x.shape
    return pl.pallas_call(
        _final_norm_kernel,
        out_shape=jax.ShapeDtypeStruct((B, N, D), jnp.float32),
        grid=(B,),
        in_specs=[pl.BlockSpec((1, N, D), lambda b: (b, 0, 0)),
                  pl.BlockSpec((1, D), lambda b: (0, 0))],
        out_specs=pl.BlockSpec((1, N, D), lambda b: (b, 0, 0)),
        compiler_params=pltpu.CompilerParams(dimension_semantics=("parallel",)),
    )(x, gamma)


def modalities_to_tensor_jax(modalities, pad_value=0):
    max_m = max(len(m) for m in modalities)
    padded = [list(m) + [(pad_value, pad_value)] * (max_m - len(m)) for m in modalities]
    return jnp.asarray(padded, dtype=jnp.int32)          # (b, m, 2)


def transformer_forward(x, params, *, heads, dim_head,
                        attn_mask=None, modalities=None, softcap=50.0):
    assert (attn_mask is not None) ^ (modalities is not None)
    B, N, D = x.shape
    offsets = lengths = mask_i8 = None
    if modalities is not None:
        tbl = modalities_to_tensor_jax(modalities)       # (B, M, 2) int32
        offsets, lengths = tbl[..., 0], tbl[..., 1]      # SMEM scalar-prefetch args
    else:
        if attn_mask.ndim == 2:
            attn_mask = jnp.broadcast_to(attn_mask, (B, N, N))
        mask_i8 = attn_mask.astype(jnp.int8)

    n_layers = len(params["layers"])
    if n_layers == 0:
        return _final_norm_call(x, params["norm_gamma"])
    for i, lp in enumerate(params["layers"]):
        x = _layer_call(x, lp, params["norm_gamma"], heads=heads,
                        dim_head=dim_head, softcap=softcap,
                        apply_final_norm=(i == n_layers - 1),
                        offsets=offsets, lengths=lengths, mask_i8=mask_i8)
    return x


# ------------------------- deterministic parameters -------------------------

def init_params(key, dim, depth, heads, dim_head, ff_expansion=4):
    dim_attn_inner = heads * dim_head
    ff_inner = int(dim * ff_expansion * 2 / 3)
    layers = []
    for _ in range(depth):
        key, k0, k1, k2, k3, k4, k5 = jax.random.split(key, 7)
        # packed qkv weight, column order (qkv, head, dim_head) as in torch
        wqkv = jax.random.normal(k0, (dim, 3 * dim_attn_inner), jnp.float32) * 0.02
        wo = jax.random.normal(k1, (dim_attn_inner, dim), jnp.float32) * 0.02
        w1 = jax.random.normal(k2, (dim, 2 * ff_inner), jnp.float32) * 0.02
        b1 = jax.random.normal(k3, (2 * ff_inner,), jnp.float32) * 0.02
        w2 = jax.random.normal(k4, (ff_inner, dim), jnp.float32) * 0.02
        b2 = jax.random.normal(k5, (dim,), jnp.float32) * 0.02
        layers.append(dict(
            g_attn=jnp.zeros((1, dim), jnp.float32),     # RMSNorm gamma init = 0
            wqkv=wqkv.astype(jnp.bfloat16),
            wo=wo.astype(jnp.bfloat16),
            g_ff=jnp.zeros((1, dim), jnp.float32),
            w1=w1.astype(jnp.bfloat16),                  # packed value|gate halves
            b1=b1[None, :],
            w2=w2.astype(jnp.bfloat16),
            b2=b2[None, :],
        ))
    return dict(layers=layers, norm_gamma=jnp.zeros((1, dim), jnp.float32))


# ----------------------------------- main -----------------------------------

if __name__ == "__main__":
    dim, depth, heads, dim_head = 32, 2, 2, 16
    B, N = 2, 8

    key = jax.random.PRNGKey(0)
    kx, kp = jax.random.split(key)
    x = jax.random.normal(kx, (B, N, dim), jnp.float32)
    params = init_params(kp, dim, depth, heads, dim_head)

    # one (offset, length) modality span per batch element
    modalities = [[(2, 3)], [(1, 4)]]

    out = transformer_forward(x, params, heads=heads, dim_head=dim_head,
                              modalities=modalities)
    jax.block_until_ready(out)
    assert out.shape == (B, N, dim) and out.dtype == jnp.float32
    print("KERNEL_OK")
</pallas_src>

<mosaic_0001>
module attributes {stable_mosaic.version = 11 : i64} {
  func.func @_modal_layer_kernel(%arg0: i32, %arg1: memref<2x1xi32, #tpu.memory_space<smem>>, %arg2: memref<2x1xi32, #tpu.memory_space<smem>>, %arg3: memref<1x8x32xf32, #tpu.memory_space<vmem>>, %arg4: memref<1x32xf32, #tpu.memory_space<vmem>>, %arg5: memref<32x96xbf16, #tpu.memory_space<vmem>>, %arg6: memref<32x32xbf16, #tpu.memory_space<vmem>>, %arg7: memref<1x32xf32, #tpu.memory_space<vmem>>, %arg8: memref<32x170xbf16, #tpu.memory_space<vmem>>, %arg9: memref<1x170xf32, #tpu.memory_space<vmem>>, %arg10: memref<85x32xbf16, #tpu.memory_space<vmem>>, %arg11: memref<1x32xf32, #tpu.memory_space<vmem>>, %arg12: memref<1x32xf32, #tpu.memory_space<vmem>>, %arg13: memref<1x8x32xf32, #tpu.memory_space<vmem>>) attributes {dimension_semantics = [#tpu.dimension_semantics<parallel>], iteration_bounds = array<i64: 2>, scalar_prefetch = 2 : i64, scratch_operands = 0 : i64, tpu.core_type = #tpu.core_type<tc>, window_params = [{transform_indices = @transform_0, window_bounds = array<i64: 1, 8, 32>}, {pipeline_mode = #tpu.pipeline_mode<synchronous>, transform_indices = @transform_1, window_bounds = array<i64: 1, 32>}, {pipeline_mode = #tpu.pipeline_mode<synchronous>, transform_indices = @transform_2, window_bounds = array<i64: 32, 96>}, {pipeline_mode = #tpu.pipeline_mode<synchronous>, transform_indices = @transform_3, window_bounds = array<i64: 32, 32>}, {pipeline_mode = #tpu.pipeline_mode<synchronous>, transform_indices = @transform_4, window_bounds = array<i64: 1, 32>}, {pipeline_mode = #tpu.pipeline_mode<synchronous>, transform_indices = @transform_5, window_bounds = array<i64: 32, 170>}, {pipeline_mode = #tpu.pipeline_mode<synchronous>, transform_indices = @transform_6, window_bounds = array<i64: 1, 170>}, {pipeline_mode = #tpu.pipeline_mode<synchronous>, transform_indices = @transform_7, window_bounds = array<i64: 85, 32>}, {pipeline_mode = #tpu.pipeline_mode<synchronous>, transform_indices = @transform_8, window_bounds = array<i64: 1, 32>}, {pipeline_mode = #tpu.pipeline_mode<synchronous>, transform_indices = @transform_9, window_bounds = array<i64: 1, 32>}, {transform_indices = @transform_10, window_bounds = array<i64: 1, 8, 32>}]} {
    %c0 = arith.constant 0 : index
    %c0_0 = arith.constant 0 : index
    %c0_1 = arith.constant 0 : index
    %0 = vector.load %arg3[%c0, %c0_0, %c0_1] : memref<1x8x32xf32, #tpu.memory_space<vmem>>, vector<1x8x32xf32>
    %1 = vector.shape_cast %0 : vector<1x8x32xf32> to vector<8x32xf32>
    %2 = tpu.iota {dimensions = array<i32: 0>} : vector<8x8xi32>
    %3 = tpu.iota {dimensions = array<i32: 1>} : vector<8x8xi32>
    %4 = arith.cmpi sge, %2, %3 : vector<8x8xi32>
    %5 = arith.index_cast %arg0 : i32 to index
    %c0_2 = arith.constant 0 : index
    %6 = memref.load %arg1[%5, %c0_2] : memref<2x1xi32, #tpu.memory_space<smem>>
    %7 = arith.index_cast %arg0 : i32 to index
    %c0_3 = arith.constant 0 : index
    %8 = memref.load %arg2[%7, %c0_3] : memref<2x1xi32, #tpu.memory_space<smem>>
    %9 = vector.broadcast %6 : i32 to vector<8x8xi32>
    %10 = arith.cmpi sge, %2, %9 : vector<8x8xi32>
    %11 = arith.addi %6, %8 : i32
    %12 = vector.broadcast %11 : i32 to vector<8x8xi32>
    %13 = arith.cmpi slt, %3, %12 : vector<8x8xi32>
    %14 = arith.andi %10, %13 : vector<8x8xi1>
    %15 = arith.ori %4, %14 : vector<8x8xi1>
    %c0_4 = arith.constant 0 : index
    %c0_5 = arith.constant 0 : index
    %16 = vector.load %arg4[%c0_4, %c0_5] : memref<1x32xf32, #tpu.memory_space<vmem>>, vector<1x32xf32>
    %c0_6 = arith.constant 0 : index
    %c0_7 = arith.constant 0 : index
    %17 = vector.load %arg5[%c0_6, %c0_7] : memref<32x96xbf16, #tpu.memory_space<vmem>>, vector<32x96xbf16>
    %c0_8 = arith.constant 0 : index
    %c0_9 = arith.constant 0 : index
    %18 = vector.load %arg6[%c0_8, %c0_9] : memref<32x32xbf16, #tpu.memory_space<vmem>>, vector<32x32xbf16>
    %c0_10 = arith.constant 0 : index
    %c0_11 = arith.constant 0 : index
    %19 = vector.load %arg7[%c0_10, %c0_11] : memref<1x32xf32, #tpu.memory_space<vmem>>, vector<1x32xf32>
    %c0_12 = arith.constant 0 : index
    %c0_13 = arith.constant 0 : index
    %20 = vector.load %arg8[%c0_12, %c0_13] : memref<32x170xbf16, #tpu.memory_space<vmem>>, vector<32x170xbf16>
    %c0_14 = arith.constant 0 : index
    %c0_15 = arith.constant 0 : index
    %21 = vector.load %arg9[%c0_14, %c0_15] : memref<1x170xf32, #tpu.memory_space<vmem>>, vector<1x170xf32>
    %c0_16 = arith.constant 0 : index
    %c0_17 = arith.constant 0 : index
    %22 = vector.load %arg10[%c0_16, %c0_17] : memref<85x32xbf16, #tpu.memory_space<vmem>>, vector<85x32xbf16>
    %c0_18 = arith.constant 0 : index
    %c0_19 = arith.constant 0 : index
    %23 = vector.load %arg11[%c0_18, %c0_19] : memref<1x32xf32, #tpu.memory_space<vmem>>, vector<1x32xf32>
    %24 = arith.mulf %1, %1 : vector<8x32xf32>
    %cst = arith.constant dense<0.000000e+00> : vector<8xf32>
    %25 = vector.multi_reduction <add>, %24, %cst [1] : vector<8x32xf32> to vector<8xf32>
    %26 = vector.shape_cast %25 : vector<8xf32> to vector<8x1xf32>
    %cst_20 = arith.constant 1.000000e-24 : f32
    %27 = vector.broadcast %cst_20 : f32 to vector<8x1xf32>
    %28 = arith.maximumf %26, %27 : vector<8x1xf32>
    %29 = math.rsqrt %28 : vector<8x1xf32>
    %30 = vector.broadcast %29 : vector<8x1xf32> to vector<8x32xf32>
    %31 = arith.mulf %1, %30 : vector<8x32xf32>
    %cst_21 = arith.constant 5.65685415 : f32
    %32 = vector.broadcast %cst_21 : f32 to vector<8x32xf32>
    %33 = arith.mulf %31, %32 : vector<8x32xf32>
    %cst_22 = arith.constant 1.000000e+00 : f32
    %34 = vector.broadcast %cst_22 : f32 to vector<1x32xf32>
    %35 = arith.addf %16, %34 : vector<1x32xf32>
    %36 = vector.broadcast %35 : vector<1x32xf32> to vector<8x32xf32>
    %37 = arith.mulf %33, %36 : vector<8x32xf32>
    %38 = arith.truncf %37 : vector<8x32xf32> to vector<8x32xbf16>
    %cst_23 = arith.constant dense<0.000000e+00> : vector<8x96xf32>
    %39 = tpu.matmul %38, %17, %cst_23 {dimension_numbers = #tpu.dot_dimension_numbers<[1], [0], [0], [1], [0, 0, 1, 1], [], []>} : vector<8x32xbf16>, vector<32x96xbf16>, vector<8x96xf32> -> vector<8x96xf32>
    %40 = vector.extract_strided_slice %39 {offsets = [0, 0], sizes = [8, 16], strides = [1, 1]} : vector<8x96xf32> to vector<8x16xf32>
    %41 = arith.truncf %40 : vector<8x16xf32> to vector<8x16xbf16>
    %42 = vector.extract_strided_slice %39 {offsets = [0, 32], sizes = [8, 16], strides = [1, 1]} : vector<8x96xf32> to vector<8x16xf32>
    %43 = arith.truncf %42 : vector<8x16xf32> to vector<8x16xbf16>
    %44 = vector.extract_strided_slice %39 {offsets = [0, 64], sizes = [8, 16], strides = [1, 1]} : vector<8x96xf32> to vector<8x16xf32>
    %45 = arith.truncf %44 : vector<8x16xf32> to vector<8x16xbf16>
    %cst_24 = arith.constant dense<0.000000e+00> : vector<8x8xf32>
    %46 = tpu.matmul %41, %43, %cst_24 {dimension_numbers = #tpu.dot_dimension_numbers<[1], [1], [0], [0], [0, 0, 1, 0], [], []>} : vector<8x16xbf16>, vector<8x16xbf16>, vector<8x8xf32> -> vector<8x8xf32>
    %cst_25 = arith.constant 5.000000e-03 : f32
    %47 = vector.broadcast %cst_25 : f32 to vector<8x8xf32>
    %48 = arith.mulf %46, %47 : vector<8x8xf32>
    %49 = math.tanh %48 : vector<8x8xf32>
    %cst_26 = arith.constant 5.000000e+01 : f32
    %50 = vector.broadcast %cst_26 : f32 to vector<8x8xf32>
    %51 = arith.mulf %49, %50 : vector<8x8xf32>
    %cst_27 = arith.constant -3.40282347E+38 : f32
    %52 = vector.broadcast %cst_27 : f32 to vector<8x8xf32>
    %53 = arith.select %15, %51, %52 : vector<8x8xi1>, vector<8x8xf32>
    %cst_28 = arith.constant dense<0xFF800000> : vector<8xf32>
    %54 = vector.multi_reduction <maximumf>, %53, %cst_28 [1] : vector<8x8xf32> to vector<8xf32>
    %55 = vector.shape_cast %54 : vector<8xf32> to vector<8x1xf32>
    %56 = vector.broadcast %55 : vector<8x1xf32> to vector<8x8xf32>
    %57 = arith.subf %53, %56 : vector<8x8xf32>
    %58 = math.exp %57 : vector<8x8xf32>
    %cst_29 = arith.constant dense<0.000000e+00> : vector<8xf32>
    %59 = vector.multi_reduction <add>, %58, %cst_29 [1] : vector<8x8xf32> to vector<8xf32>
    %60 = vector.shape_cast %59 : vector<8xf32> to vector<8x1xf32>
    %61 = tpu.reciprocal %60 {approx = true} : vector<8x1xf32> -> vector<8x1xf32>
    %62 = vector.broadcast %61 : vector<8x1xf32> to vector<8x8xf32>
    %63 = arith.mulf %58, %62 : vector<8x8xf32>
    %64 = arith.truncf %63 : vector<8x8xf32> to vector<8x8xbf16>
    %cst_30 = arith.constant dense<0.000000e+00> : vector<8x16xf32>
    %65 = tpu.matmul %64, %45, %cst_30 {dimension_numbers = #tpu.dot_dimension_numbers<[1], [0], [0], [1], [0, 0, 1, 1], [], []>} : vector<8x8xbf16>, vector<8x16xbf16>, vector<8x16xf32> -> vector<8x16xf32>
    %66 = vector.extract_strided_slice %39 {offsets = [0, 16], sizes = [8, 16], strides = [1, 1]} : vector<8x96xf32> to vector<8x16xf32>
    %67 = arith.truncf %66 : vector<8x16xf32> to vector<8x16xbf16>
    %68 = vector.extract_strided_slice %39 {offsets = [0, 48], sizes = [8, 16], strides = [1, 1]} : vector<8x96xf32> to vector<8x16xf32>
    %69 = arith.truncf %68 : vector<8x16xf32> to vector<8x16xbf16>
    %70 = vector.extract_strided_slice %39 {offsets = [0, 80], sizes = [8, 16], strides = [1, 1]} : vector<8x96xf32> to vector<8x16xf32>
    %71 = arith.truncf %70 : vector<8x16xf32> to vector<8x16xbf16>
    %cst_31 = arith.constant dense<0.000000e+00> : vector<8x8xf32>
    %72 = tpu.matmul %67, %69, %cst_31 {dimension_numbers = #tpu.dot_dimension_numbers<[1], [1], [0], [0], [0, 0, 1, 0], [], []>} : vector<8x16xbf16>, vector<8x16xbf16>, vector<8x8xf32> -> vector<8x8xf32>
    %cst_32 = arith.constant 5.000000e-03 : f32
    %73 = vector.broadcast %cst_32 : f32 to vector<8x8xf32>
    %74 = arith.mulf %72, %73 : vector<8x8xf32>
    %75 = math.tanh %74 : vector<8x8xf32>
    %cst_33 = arith.constant 5.000000e+01 : f32
    %76 = vector.broadcast %cst_33 : f32 to vector<8x8xf32>
    %77 = arith.mulf %75, %76 : vector<8x8xf32>
    %cst_34 = arith.constant -3.40282347E+38 : f32
    %78 = vector.broadcast %cst_34 : f32 to vector<8x8xf32>
    %79 = arith.select %15, %77, %78 : vector<8x8xi1>, vector<8x8xf32>
    %cst_35 = arith.constant dense<0xFF800000> : vector<8xf32>
    %80 = vector.multi_reduction <maximumf>, %79, %cst_35 [1] : vector<8x8xf32> to vector<8xf32>
    %81 = vector.shape_cast %80 : vector<8xf32> to vector<8x1xf32>
    %82 = vector.broadcast %81 : vector<8x1xf32> to vector<8x8xf32>
    %83 = arith.subf %79, %82 : vector<8x8xf32>
    %84 = math.exp %83 : vector<8x8xf32>
    %cst_36 = arith.constant dense<0.000000e+00> : vector<8xf32>
    %85 = vector.multi_reduction <add>, %84, %cst_36 [1] : vector<8x8xf32> to vector<8xf32>
    %86 = vector.shape_cast %85 : vector<8xf32> to vector<8x1xf32>
    %87 = tpu.reciprocal %86 {approx = true} : vector<8x1xf32> -> vector<8x1xf32>
    %88 = vector.broadcast %87 : vector<8x1xf32> to vector<8x8xf32>
    %89 = arith.mulf %84, %88 : vector<8x8xf32>
    %90 = arith.truncf %89 : vector<8x8xf32> to vector<8x8xbf16>
    %cst_37 = arith.constant dense<0.000000e+00> : vector<8x16xf32>
    %91 = tpu.matmul %90, %71, %cst_37 {dimension_numbers = #tpu.dot_dimension_numbers<[1], [0], [0], [1], [0, 0, 1, 1], [], []>} : vector<8x8xbf16>, vector<8x16xbf16>, vector<8x16xf32> -> vector<8x16xf32>
    %92 = tpu.concatenate %65, %91 in 1 : vector<8x16xf32>, vector<8x16xf32> -> vector<8x32xf32>
    %93 = arith.truncf %92 : vector<8x32xf32> to vector<8x32xbf16>
    %cst_38 = arith.constant dense<0.000000e+00> : vector<8x32xf32>
    %94 = tpu.matmul %93, %18, %cst_38 {dimension_numbers = #tpu.dot_dimension_numbers<[1], [0], [0], [1], [0, 0, 1, 1], [], []>} : vector<8x32xbf16>, vector<32x32xbf16>, vector<8x32xf32> -> vector<8x32xf32>
    %95 = arith.addf %94, %1 : vector<8x32xf32>
    %96 = arith.mulf %95, %95 : vector<8x32xf32>
    %cst_39 = arith.constant dense<0.000000e+00> : vector<8xf32>
    %97 = vector.multi_reduction <add>, %96, %cst_39 [1] : vector<8x32xf32> to vector<8xf32>
    %98 = vector.shape_cast %97 : vector<8xf32> to vector<8x1xf32>
    %cst_40 = arith.constant 1.000000e-24 : f32
    %99 = vector.broadcast %cst_40 : f32 to vector<8x1xf32>
    %100 = arith.maximumf %98, %99 : vector<8x1xf32>
    %101 = math.rsqrt %100 : vector<8x1xf32>
    %102 = vector.broadcast %101 : vector<8x1xf32> to vector<8x32xf32>
    %103 = arith.mulf %95, %102 : vector<8x32xf32>
    %cst_41 = arith.constant 5.65685415 : f32
    %104 = vector.broadcast %cst_41 : f32 to vector<8x32xf32>
    %105 = arith.mulf %103, %104 : vector<8x32xf32>
    %cst_42 = arith.constant 1.000000e+00 : f32
    %106 = vector.broadcast %cst_42 : f32 to vector<1x32xf32>
    %107 = arith.addf %19, %106 : vector<1x32xf32>
    %108 = vector.broadcast %107 : vector<1x32xf32> to vector<8x32xf32>
    %109 = arith.mulf %105, %108 : vector<8x32xf32>
    %110 = arith.truncf %109 : vector<8x32xf32> to vector<8x32xbf16>
    %cst_43 = arith.constant dense<0.000000e+00> : vector<8x170xf32>
    %111 = tpu.matmul %110, %20, %cst_43 {dimension_numbers = #tpu.dot_dimension_numbers<[1], [0], [0], [1], [0, 0, 1, 1], [], []>} : vector<8x32xbf16>, vector<32x170xbf16>, vector<8x170xf32> -> vector<8x170xf32>
    %112 = vector.broadcast %21 : vector<1x170xf32> to vector<8x170xf32>
    %113 = arith.addf %111, %112 : vector<8x170xf32>
    %114 = vector.extract_strided_slice %113 {offsets = [0, 85], sizes = [8, 85], strides = [1, 1]} : vector<8x170xf32> to vector<8x85xf32>
    %cst_44 = arith.constant 5.000000e-01 : f32
    %115 = vector.broadcast %cst_44 : f32 to vector<8x85xf32>
    %116 = arith.mulf %115, %114 : vector<8x85xf32>
    %cst_45 = arith.constant 0.707106769 : f32
    %117 = vector.broadcast %cst_45 : f32 to vector<8x85xf32>
    %118 = arith.mulf %114, %117 : vector<8x85xf32>
    %119 = math.erf %118 : vector<8x85xf32>
    %cst_46 = arith.constant 1.000000e+00 : f32
    %120 = vector.broadcast %cst_46 : f32 to vector<8x85xf32>
    %121 = arith.addf %120, %119 : vector<8x85xf32>
    %122 = arith.mulf %116, %121 : vector<8x85xf32>
    %123 = vector.extract_strided_slice %113 {offsets = [0, 0], sizes = [8, 85], strides = [1, 1]} : vector<8x170xf32> to vector<8x85xf32>
    %124 = arith.mulf %122, %123 : vector<8x85xf32>
    %125 = arith.truncf %124 : vector<8x85xf32> to vector<8x85xbf16>
    %cst_47 = arith.constant dense<0.000000e+00> : vector<8x32xf32>
    %126 = tpu.matmul %125, %22, %cst_47 {dimension_numbers = #tpu.dot_dimension_numbers<[1], [0], [0], [1], [0, 0, 1, 1], [], []>} : vector<8x85xbf16>, vector<85x32xbf16>, vector<8x32xf32> -> vector<8x32xf32>
    %127 = vector.broadcast %23 : vector<1x32xf32> to vector<8x32xf32>
    %128 = arith.addf %126, %127 : vector<8x32xf32>
    %129 = arith.addf %128, %95 : vector<8x32xf32>
    %c0_48 = arith.constant 0 : index
    %c0_49 = arith.constant 0 : index
    %c0_50 = arith.constant 0 : index
    %130 = vector.load %arg13[%c0_48, %c0_49, %c0_50] : memref<1x8x32xf32, #tpu.memory_space<vmem>>, vector<1x8x32xf32>
    %131 = vector.shape_cast %130 : vector<1x8x32xf32> to vector<8x32xf32>
    %132 = vector.shape_cast %129 : vector<8x32xf32> to vector<1x8x32xf32>
    tpu.vector_store %arg13[%c0_48, %c0_49, %c0_50], %132 {strides = array<i32>} : memref<1x8x32xf32, #tpu.memory_space<vmem>>, vector<1x8x32xf32>,
    return
  }
  func.func @transform_0(%arg0: i32, %arg1: memref<2x1xi32, #tpu.memory_space<smem>>, %arg2: memref<2x1xi32, #tpu.memory_space<smem>>) -> (i32, i32, i32) {
    %c0_i32 = arith.constant 0 : i32
    %c0_i32_0 = arith.constant 0 : i32
    %c0_i32_1 = arith.constant 0 : i32
    return %arg0, %c0_i32, %c0_i32_0 : i32, i32, i32
  }
  func.func @transform_1(%arg0: i32, %arg1: memref<2x1xi32, #tpu.memory_space<smem>>, %arg2: memref<2x1xi32, #tpu.memory_space<smem>>) -> (i32, i32) {
    %c0_i32 = arith.constant 0 : i32
    %c0_i32_0 = arith.constant 0 : i32
    %c0_i32_1 = arith.constant 0 : i32
    return %c0_i32, %c0_i32_0 : i32, i32
  }
  func.func @transform_2(%arg0: i32, %arg1: memref<2x1xi32, #tpu.memory_space<smem>>, %arg2: memref<2x1xi32, #tpu.memory_space<smem>>) -> (i32, i32) {
    %c0_i32 = arith.constant 0 : i32
    %c0_i32_0 = arith.constant 0 : i32
    %c0_i32_1 = arith.constant 0 : i32
    return %c0_i32, %c0_i32_0 : i32, i32
  }
  func.func @transform_3(%arg0: i32, %arg1: memref<2x1xi32, #tpu.memory_space<smem>>, %arg2: memref<2x1xi32, #tpu.memory_space<smem>>) -> (i32, i32) {
    %c0_i32 = arith.constant 0 : i32
    %c0_i32_0 = arith.constant 0 : i32
    %c0_i32_1 = arith.constant 0 : i32
    return %c0_i32, %c0_i32_0 : i32, i32
  }
  func.func @transform_4(%arg0: i32, %arg1: memref<2x1xi32, #tpu.memory_space<smem>>, %arg2: memref<2x1xi32, #tpu.memory_space<smem>>) -> (i32, i32) {
    %c0_i32 = arith.constant 0 : i32
    %c0_i32_0 = arith.constant 0 : i32
    %c0_i32_1 = arith.constant 0 : i32
    return %c0_i32, %c0_i32_0 : i32, i32
  }
  func.func @transform_5(%arg0: i32, %arg1: memref<2x1xi32, #tpu.memory_space<smem>>, %arg2: memref<2x1xi32, #tpu.memory_space<smem>>) -> (i32, i32) {
    %c0_i32 = arith.constant 0 : i32
    %c0_i32_0 = arith.constant 0 : i32
    %c0_i32_1 = arith.constant 0 : i32
    return %c0_i32, %c0_i32_0 : i32, i32
  }
  func.func @transform_6(%arg0: i32, %arg1: memref<2x1xi32, #tpu.memory_space<smem>>, %arg2: memref<2x1xi32, #tpu.memory_space<smem>>) -> (i32, i32) {
    %c0_i32 = arith.constant 0 : i32
    %c0_i32_0 = arith.constant 0 : i32
    %c0_i32_1 = arith.constant 0 : i32
    return %c0_i32, %c0_i32_0 : i32, i32
  }
  func.func @transform_7(%arg0: i32, %arg1: memref<2x1xi32, #tpu.memory_space<smem>>, %arg2: memref<2x1xi32, #tpu.memory_space<smem>>) -> (i32, i32) {
    %c0_i32 = arith.constant 0 : i32
    %c0_i32_0 = arith.constant 0 : i32
    %c0_i32_1 = arith.constant 0 : i32
    return %c0_i32, %c0_i32_0 : i32, i32
  }
  func.func @transform_8(%arg0: i32, %arg1: memref<2x1xi32, #tpu.memory_space<smem>>, %arg2: memref<2x1xi32, #tpu.memory_space<smem>>) -> (i32, i32) {
    %c0_i32 = arith.constant 0 : i32
    %c0_i32_0 = arith.constant 0 : i32
    %c0_i32_1 = arith.constant 0 : i32
    return %c0_i32, %c0_i32_0 : i32, i32
  }
  func.func @transform_9(%arg0: i32, %arg1: memref<2x1xi32, #tpu.memory_space<smem>>, %arg2: memref<2x1xi32, #tpu.memory_space<smem>>) -> (i32, i32) {
    %c0_i32 = arith.constant 0 : i32
    %c0_i32_0 = arith.constant 0 : i32
    %c0_i32_1 = arith.constant 0 : i32
    return %c0_i32, %c0_i32_0 : i32, i32
  }
  func.func @transform_10(%arg0: i32, %arg1: memref<2x1xi32, #tpu.memory_space<smem>>, %arg2: memref<2x1xi32, #tpu.memory_space<smem>>) -> (i32, i32, i32) {
    %c0_i32 = arith.constant 0 : i32
    %c0_i32_0 = arith.constant 0 : i32
    %c0_i32_1 = arith.constant 0 : i32
    return %arg0, %c0_i32, %c0_i32_0 : i32, i32, i32
  }
}

</mosaic_0001>

<llo_original>
// kernel: tpu_custom_call.1
$region0: #{tpu_custom_call.1}
  #allocation0 [shape = 'u32[]', space=smem, size = 0x4, offset = 0x4, fixed_abs, tag = 'smem constant byte address 0x4 - core index']
  #allocation1 [shape = 'u32[144,128]{1,0:T(1,128)}', space=vmem, size = 0x12000, scoped, tag = 'internal scratch']
  #allocation2 [shape = 's32[1]{0}', space=sflag, size = 0x4, scoped, tag = 'scoped memory for tpu_custom_call.1']
  #allocation3 [shape = 'u8[1024]{0}', space=smem, size = 0x400, scoped, tag = 'prefetched SMEM operand 0']
  #allocation4 [shape = 'u8[1024]{0}', space=smem, size = 0x400, scoped, tag = 'prefetched SMEM operand 1']
  %s0 = inlined_call_operand.vmem [shape: s32[2,1], index: 0, kind: input, shape index: {}]
  %s1 = inlined_call_operand.vmem [shape: s32[2,1], index: 1, kind: input, shape index: {}]
  %s2 = inlined_call_operand.vmem [shape: f32[2,8,32], index: 2, kind: input, shape index: {}]
  %s3 = inlined_call_operand.vmem [shape: f32[1,32], index: 3, kind: input, shape index: {}]
  %s4 = inlined_call_operand.vmem [shape: bf16[32,96], index: 4, kind: input, shape index: {}]
  %s5 = inlined_call_operand.vmem [shape: bf16[32,32], index: 5, kind: input, shape index: {}]
  %s6 = inlined_call_operand.hbm [shape: f32[1,32], index: 6, kind: input, shape index: {}]
  %s7 = inlined_call_operand.vmem [shape: bf16[32,170], index: 7, kind: input, shape index: {}]
  %s8 = inlined_call_operand.hbm [shape: f32[1,170], index: 8, kind: input, shape index: {}]
  %s9 = inlined_call_operand.vmem [shape: bf16[85,32], index: 9, kind: input, shape index: {}]
  %s10 = inlined_call_operand.vmem [shape: f32[1,32], index: 10, kind: input, shape index: {}]
  %s11 = inlined_call_operand.vmem [shape: f32[1,32], index: 11, kind: input, shape index: {}]
  %s12 = inlined_call_operand.hbm [shape: f32[2,8,32], index: 12, kind: output, shape index: {}]
  %s13 = sld [smem:[#allocation0]]
  $region81: #{tpu_custom_call.1} parent=0
    _
  %s15 = ssub.s32 1, %s13
  %s16 = scalar_select 0, %s15, %s13
  %s17 = sshll.u32 %s0, 4
  %s18 = int_to_ptr.vmem [resolvable:$true] %s17
  %20 = dma.vmem_to_smem %s18, 32, [#allocation3], [#allocation2]
  %s21 = sshll.u32 %s1, 4
  %s22 = int_to_ptr.vmem [resolvable:$true] %s21
  %24 = dma.vmem_to_smem %s22, 32, [#allocation4], [#allocation2]
  %25 = dma.done [#allocation2], 64
  %26 = sfence
  $region1: #{tpu_custom_call.1} parent=0
    #allocation5 [shape = 'u8[512]{0}', space=vmem, size = 0x400, scoped, tag = 'input window, operand 6, single buffered']
    #allocation6 [shape = 's32[2]{0}', space=sflag, size = 0x8, scoped, tag = 'scoped memory for tpu_custom_call.1']
    #allocation7 [shape = 's32[2]{0}', space=sflag, size = 0x8, scoped, tag = 'scoped memory for tpu_custom_call.1']
    #allocation8 [shape = 'u8[1024]{0}', space=vmem, size = 0x400, scoped, tag = 'input window, operand 8, single buffered']
    #allocation9 [shape = 's32[1]{0}', space=sflag, size = 0x4, scoped, tag = 'scoped memory for tpu_custom_call.1']
    #allocation10 [shape = 'u8[8192]{0}', space=vmem, size = 0x2000, scoped, tag = 'output window, operand 0']
    %27 = vsyncpa [#allocation6], 0
    %28 = vsyncpa [#allocation9], 0
    %29 = vsyncpa [#allocation7], 0
    %s30 = scalar_lea.sflag [#allocation7], 1
    %31 = vsyncpa %s30, 0
    loop: start=0, step=1, limit=4
    $region2: #{tpu_custom_call.1} parent=1 // loop_pre_header
      _
    $region3: #{tpu_custom_call.1} parent=1 // loop_header
      %s33 = sphi 0, %s37
      %p34 = scmp.ge.s32.totalorder %s33, 4
      %s43 = sphi 0, %s45
      %s46 = sphi 0, %s43
      %s47 = sphi 0, %s46
      %s63 = sphi 0, %s47
      %s67 = sphi 0, %s67
      %s69 = sphi 0, %s67
      %s70 = sphi 0, %s69
      %s84 = sphi 0, %s70
      %s88 = sphi 0, %s88
      %s90 = sphi 0, %s88
      %s91 = sphi 0, %s90
      %s105 = sphi 0, %s91
      %s109 = sphi 0, %s109
      %s111 = sphi 0, %s109
      %s112 = sphi 0, %s111
      %s126 = sphi 0, %s112
      %s130 = sphi 0, %s130
      %s132 = sphi 0, %s130
      %s133 = sphi 0, %s132
      %s147 = sphi 0, %s133
      %s151 = sphi 0, %s151
      %s153 = sphi 0, %s151
      %s154 = sphi 0, %s153
      %s168 = sphi 0, %s154
      %s172 = sphi 0, %s172
      %s174 = sphi 0, %s172
      %s175 = sphi 0, %s174
      %s189 = sphi 0, %s175
      %s193 = sphi 0, %s193
      %s195 = sphi 0, %s193
      %s196 = sphi 0, %s195
      %s210 = sphi 0, %s196
      %s214 = sphi 0, %s214
      %s216 = sphi 0, %s214
      %s217 = sphi 0, %s216
      %s231 = sphi 0, %s217
      %s235 = sphi 0, %s235
      %s237 = sphi 0, %s235
      %s238 = sphi 0, %s237
      %s252 = sphi 0, %s238
      %s258 = sphi 0, %s260
      %s261 = sphi 0, %s258
      %s262 = sphi 0, %s261
      %s278 = sphi 0, %s262
    $region4: #{tpu_custom_call.1} parent=1 // loop_header_branch
      %36 = sbr.rel (%p34) target = $region8
    $region5: #{tpu_custom_call.1} parent=1 // loop_body
      %s38 = ssub.s32 %s33, 1
      %s39 = ssub.s32 %s33, 2
      %s40 = sadd.s32 %s33, 1
      %s41 = ssub.s32 %s33, %s40
      %p42 = scmp.eq.s32.totalorder %s41, 0
      %s44 = sadd.s32 %s43, 1
      %s45 = scalar_select %p42, %s43, %s44
      %p48 = pneg %p42
      %p49 = scmp.eq.s32.totalorder %s33, 1
      %p50 = por %p48, %p49
      %p51 = scmp.ne.s32.totalorder %s43, %s46
      %p52 = scmp.eq.s32.totalorder %s33, 0
      %p53 = por %p51, %p52
      %p54 = scmp.ne.s32.totalorder %s43, %s46
      %p55 = scmp.eq.s32.totalorder %s38, 1
      %p56 = por %p54, %p55
      %p57 = scmp.ne.s32.totalorder %s46, %s47
      %p58 = scmp.eq.s32.totalorder %s38, 0
      %p59 = por %p57, %p58
      %p60 = scmp.ne.s32.totalorder %s46, %s47
      %p61 = scmp.eq.s32.totalorder %s39, 1
      %p62 = por %p60, %p61
      %p64 = scmp.ne.s32.totalorder %s47, %s63
      %p65 = scmp.eq.s32.totalorder %s39, 0
      %p66 = por %p64, %p65
      %s68 = sadd.s32 %s67, 1
      %p71 = scmp.eq.s32.totalorder %s33, 1
      %p72 = scmp.ne.s32.totalorder %s67, %s69
      %p73 = scmp.eq.s32.totalorder %s33, 0
      %p74 = por %p72, %p73
      %p75 = scmp.ne.s32.totalorder %s67, %s69
      %p76 = scmp.eq.s32.totalorder %s38, 1
      %p77 = por %p75, %p76
      %p78 = scmp.ne.s32.totalorder %s69, %s70
      %p79 = scmp.eq.s32.totalorder %s38, 0
      %p80 = por %p78, %p79
      %p81 = scmp.ne.s32.totalorder %s69, %s70
      %p82 = scmp.eq.s32.totalorder %s39, 1
      %p83 = por %p81, %p82
      %p85 = scmp.ne.s32.totalorder %s70, %s84
      %p86 = scmp.eq.s32.totalorder %s39, 0
      %p87 = por %p85, %p86
      %s89 = sadd.s32 %s88, 1
      %p92 = scmp.eq.s32.totalorder %s33, 1
      %p93 = scmp.ne.s32.totalorder %s88, %s90
      %p94 = scmp.eq.s32.totalorder %s33, 0
      %p95 = por %p93, %p94
      %p96 = scmp.ne.s32.totalorder %s88, %s90
      %p97 = scmp.eq.s32.totalorder %s38, 1
      %p98 = por %p96, %p97
      %p99 = scmp.ne.s32.totalorder %s90, %s91
      %p100 = scmp.eq.s32.totalorder %s38, 0
      %p101 = por %p99, %p100
      %p102 = scmp.ne.s32.totalorder %s90, %s91
      %p103 = scmp.eq.s32.totalorder %s39, 1
      %p104 = por %p102, %p103
      %p106 = scmp.ne.s32.totalorder %s91, %s105
      %p107 = scmp.eq.s32.totalorder %s39, 0
      %p108 = por %p106, %p107
      %s110 = sadd.s32 %s109, 1
      %p113 = scmp.eq.s32.totalorder %s33, 1
      %p114 = scmp.ne.s32.totalorder %s109, %s111
      %p115 = scmp.eq.s32.totalorder %s33, 0
      %p116 = por %p114, %p115
      %p117 = scmp.ne.s32.totalorder %s109, %s111
      %p118 = scmp.eq.s32.totalorder %s38, 1
      %p119 = por %p117, %p118
      %p120 = scmp.ne.s32.totalorder %s111, %s112
      %p121 = scmp.eq.s32.totalorder %s38, 0
      %p122 = por %p120, %p121
      %p123 = scmp.ne.s32.totalorder %s111, %s112
      %p124 = scmp.eq.s32.totalorder %s39, 1
      %p125 = por %p123, %p124
      %p127 = scmp.ne.s32.totalorder %s112, %s126
      %p128 = scmp.eq.s32.totalorder %s39, 0
      %p129 = por %p127, %p128
      %s131 = sadd.s32 %s130, 1
      %p134 = scmp.eq.s32.totalorder %s33, 1
      %p135 = scmp.ne.s32.totalorder %s130, %s132
      %p136 = scmp.eq.s32.totalorder %s33, 0
      %p137 = por %p135, %p136
      %p138 = scmp.ne.s32.totalorder %s130, %s132
      %p139 = scmp.eq.s32.totalorder %s38, 1
      %p140 = por %p138, %p139
      %p141 = scmp.ne.s32.totalorder %s132, %s133
      %p142 = scmp.eq.s32.totalorder %s38, 0
      %p143 = por %p141, %p142
      %p144 = scmp.ne.s32.totalorder %s132, %s133
      %p145 = scmp.eq.s32.totalorder %s39, 1
      %p146 = por %p144, %p145
      %p148 = scmp.ne.s32.totalorder %s133, %s147
      %p149 = scmp.eq.s32.totalorder %s39, 0
      %p150 = por %p148, %p149
      %s152 = sadd.s32 %s151, 1
      %p155 = scmp.eq.s32.totalorder %s33, 1
      %p156 = scmp.ne.s32.totalorder %s151, %s153
      %p157 = scmp.eq.s32.totalorder %s33, 0
      %p158 = por %p156, %p157
      %p159 = scmp.ne.s32.totalorder %s151, %s153
      %p160 = scmp.eq.s32.totalorder %s38, 1
      %p161 = por %p159, %p160
      %p162 = scmp.ne.s32.totalorder %s153, %s154
      %p163 = scmp.eq.s32.totalorder %s38, 0
      %p164 = por %p162, %p163
      %p165 = scmp.ne.s32.totalorder %s153, %s154
      %p166 = scmp.eq.s32.totalorder %s39, 1
      %p167 = por %p165, %p166
      %p169 = scmp.ne.s32.totalorder %s154, %s168
      %p170 = scmp.eq.s32.totalorder %s39, 0
      %p171 = por %p169, %p170
      %s173 = sadd.s32 %s172, 1
      %p176 = scmp.eq.s32.totalorder %s33, 1
      %p177 = scmp.ne.s32.totalorder %s172, %s174
      %p178 = scmp.eq.s32.totalorder %s33, 0
      %p179 = por %p177, %p178
      %p180 = scmp.ne.s32.totalorder %s172, %s174
      %p181 = scmp.eq.s32.totalorder %s38, 1
      %p182 = por %p180, %p181
      %p183 = scmp.ne.s32.totalorder %s174, %s175
      %p184 = scmp.eq.s32.totalorder %s38, 0
      %p185 = por %p183, %p184
      %p186 = scmp.ne.s32.totalorder %s174, %s175
      %p187 = scmp.eq.s32.totalorder %s39, 1
      %p188 = por %p186, %p187
      %p190 = scmp.ne.s32.totalorder %s175, %s189
      %p191 = scmp.eq.s32.totalorder %s39, 0
      %p192 = por %p190, %p191
      %s194 = sadd.s32 %s193, 1
      %p197 = scmp.eq.s32.totalorder %s33, 1
      %p198 = scmp.ne.s32.totalorder %s193, %s195
      %p199 = scmp.eq.s32.totalorder %s33, 0
      %p200 = por %p198, %p199
      %p201 = scmp.ne.s32.totalorder %s193, %s195
      %p202 = scmp.eq.s32.totalorder %s38, 1
      %p203 = por %p201, %p202
      %p204 = scmp.ne.s32.totalorder %s195, %s196
      %p205 = scmp.eq.s32.totalorder %s38, 0
      %p206 = por %p204, %p205
      %p207 = scmp.ne.s32.totalorder %s195, %s196
      %p208 = scmp.eq.s32.totalorder %s39, 1
      %p209 = por %p207, %p208
      %p211 = scmp.ne.s32.totalorder %s196, %s210
      %p212 = scmp.eq.s32.totalorder %s39, 0
      %p213 = por %p211, %p212
      %s215 = sadd.s32 %s214, 1
      %p218 = scmp.eq.s32.totalorder %s33, 1
      %p219 = scmp.ne.s32.totalorder %s214, %s216
      %p220 = scmp.eq.s32.totalorder %s33, 0
      %p221 = por %p219, %p220
      %p222 = scmp.ne.s32.totalorder %s214, %s216
      %p223 = scmp.eq.s32.totalorder %s38, 1
      %p224 = por %p222, %p223
      %p225 = scmp.ne.s32.totalorder %s216, %s217
      %p226 = scmp.eq.s32.totalorder %s38, 0
      %p227 = por %p225, %p226
      %p228 = scmp.ne.s32.totalorder %s216, %s217
      %p229 = scmp.eq.s32.totalorder %s39, 1
      %p230 = por %p228, %p229
      %p232 = scmp.ne.s32.totalorder %s217, %s231
      %p233 = scmp.eq.s32.totalorder %s39, 0
      %p234 = por %p232, %p233
      %s236 = sadd.s32 %s235, 1
      %p239 = scmp.eq.s32.totalorder %s33, 1
      %p240 = scmp.ne.s32.totalorder %s235, %s237
      %p241 = scmp.eq.s32.totalorder %s33, 0
      %p242 = por %p240, %p241
      %p243 = scmp.ne.s32.totalorder %s235, %s237
      %p244 = scmp.eq.s32.totalorder %s38, 1
      %p245 = por %p243, %p244
      %p246 = scmp.ne.s32.totalorder %s237, %s238
      %p247 = scmp.eq.s32.totalorder %s38, 0
      %p248 = por %p246, %p247
      %p249 = scmp.ne.s32.totalorder %s237, %s238
      %p250 = scmp.eq.s32.totalorder %s39, 1
      %p251 = por %p249, %p250
      %p253 = scmp.ne.s32.totalorder %s238, %s252
      %p254 = scmp.eq.s32.totalorder %s39, 0
      %p255 = por %p253, %p254
      %s256 = ssub.s32 %s33, %s40
      %p257 = scmp.eq.s32.totalorder %s256, 0
      %s259 = sadd.s32 %s258, 1
      %s260 = scalar_select %p257, %s258, %s259
      %p263 = pneg %p257
      %p264 = scmp.eq.s32.totalorder %s33, 1
      %p265 = por %p263, %p264
      %p266 = scmp.ne.s32.totalorder %s258, %s261
      %p267 = scmp.eq.s32.totalorder %s33, 0
      %p268 = por %p266, %p267
      %p269 = scmp.ne.s32.totalorder %s258, %s261
      %p270 = scmp.eq.s32.totalorder %s38, 1
      %p271 = por %p269, %p270
      %p272 = scmp.ne.s32.totalorder %s261, %s262
      %p273 = scmp.eq.s32.totalorder %s38, 0
      %p274 = por %p272, %p273
      %p275 = scmp.ne.s32.totalorder %s261, %s262
      %p276 = scmp.eq.s32.totalorder %s39, 1
      %p277 = por %p275, %p276
      %p279 = scmp.ne.s32.totalorder %s262, %s278
      %p280 = scmp.eq.s32.totalorder %s39, 0
      %p281 = por %p279, %p280
      %p282 = scmp.le.s32.totalorder 1, %s33
      %p283 = scmp.lt.s32.totalorder %s33, 3
      %p284 = pnand %p282, %p283
      %p285 = pneg %p284
      // Predicated region
      $region9: #{tpu_custom_call.1} parent=5 // pred_check
        _
      $region10: #{tpu_custom_call.1} parent=5 // pred_check_branch
        %287 = sbr.rel (%p284) target = $region12
      $region11: #{tpu_custom_call.1} parent=5 // pred_region
        %s288 = ssub.s32 %s33, 1
        // Predicated region
        $region13: #{tpu_custom_call.1} parent=11 // pred_check
          %p289 = pneg %p80
        $region14: #{tpu_custom_call.1} parent=11 // pred_check_branch
          %291 = sbr.rel (%p289) target = $region16
        $region15: #{tpu_custom_call.1} parent=11 // pred_region
          _
        $region16: #{tpu_custom_call.1} parent=11 // pred_fallthru
          _
        // Predicated region
        $region17: #{tpu_custom_call.1} parent=11 // pred_check
          %p292 = pneg %p101
        $region18: #{tpu_custom_call.1} parent=11 // pred_check_branch
          %294 = sbr.rel (%p292) target = $region20
        $region19: #{tpu_custom_call.1} parent=11 // pred_region
          _
        $region20: #{tpu_custom_call.1} parent=11 // pred_fallthru
          _
        // Predicated region
        $region21: #{tpu_custom_call.1} parent=11 // pred_check
          %p295 = pneg %p122
        $region22: #{tpu_custom_call.1} parent=11 // pred_check_branch
          %297 = sbr.rel (%p295) target = $region24
        $region23: #{tpu_custom_call.1} parent=11 // pred_region
          _
        $region24: #{tpu_custom_call.1} parent=11 // pred_fallthru
          _
        // Predicated region
        $region25: #{tpu_custom_call.1} parent=11 // pred_check
          %p298 = pneg %p143
        $region26: #{tpu_custom_call.1} parent=11 // pred_check_branch
          %300 = sbr.rel (%p298) target = $region28
        $region27: #{tpu_custom_call.1} parent=11 // pred_region
          %s302 = ssub.s32 16, 16
          %303 = vsyncadd [#allocation6], %s302
          %s305 = sshll.u32 [#allocation5], 4
          %s306 = int_to_ptr.vmem [resolvable:$true] %s305
          %308 = dma.hbm_to_vmem [thread:$0]  %s6, 16, %s306, [#allocation6]
        $region28: #{tpu_custom_call.1} parent=11 // pred_fallthru
          _
        // Predicated region
        $region29: #{tpu_custom_call.1} parent=11 // pred_check
          %p309 = pneg %p164
        $region30: #{tpu_custom_call.1} parent=11 // pred_check_branch
          %311 = sbr.rel (%p309) target = $region32
        $region31: #{tpu_custom_call.1} parent=11 // pred_region
          _
        $region32: #{tpu_custom_call.1} parent=11 // pred_fallthru
          _
        // Predicated region
        $region33: #{tpu_custom_call.1} parent=11 // pred_check
          %p312 = pneg %p185
        $region34: #{tpu_custom_call.1} parent=11 // pred_check_branch
          %314 = sbr.rel (%p312) target = $region36
        $region35: #{tpu_custom_call.1} parent=11 // pred_region
          %s316 = ssub.s32 32, 32
          %317 = vsyncadd [#allocation9], %s316
          %s319 = sshll.u32 [#allocation8], 4
          %s320 = int_to_ptr.vmem [resolvable:$true] %s319
          %322 = dma.hbm_to_vmem [thread:$0]  %s8, 32, %s320, [#allocation9]
        $region36: #{tpu_custom_call.1} parent=11 // pred_fallthru
          _
        // Predicated region
        $region37: #{tpu_custom_call.1} parent=11 // pred_check
          %p323 = pneg %p206
        $region38: #{tpu_custom_call.1} parent=11 // pred_check_branch
          %325 = sbr.rel (%p323) target = $region40
        $region39: #{tpu_custom_call.1} parent=11 // pred_region
          _
        $region40: #{tpu_custom_call.1} parent=11 // pred_fallthru
          _
        // Predicated region
        $region41: #{tpu_custom_call.1} parent=11 // pred_check
          %p326 = pneg %p227
        $region42: #{tpu_custom_call.1} parent=11 // pred_check_branch
          %328 = sbr.rel (%p326) target = $region44
        $region43: #{tpu_custom_call.1} parent=11 // pred_region
          _
        $region44: #{tpu_custom_call.1} parent=11 // pred_fallthru
          _
        // Predicated region
        $region45: #{tpu_custom_call.1} parent=11 // pred_check
          %p329 = pneg %p248
        $region46: #{tpu_custom_call.1} parent=11 // pred_check_branch
          %331 = sbr.rel (%p329) target = $region48
        $region47: #{tpu_custom_call.1} parent=11 // pred_region
          _
        $region48: #{tpu_custom_call.1} parent=11 // pred_fallthru
          _
      $region12: #{tpu_custom_call.1} parent=5 // pred_fallthru
        _
      %p332 = scmp.lt.s32.totalorder %s33, 2
      // Predicated region
      $region49: #{tpu_custom_call.1} parent=5 // pred_check
        %p333 = pneg %p332
      $region50: #{tpu_custom_call.1} parent=5 // pred_check_branch
        %335 = sbr.rel (%p333) target = $region52
      $region51: #{tpu_custom_call.1} parent=5 // pred_region
        // Predicated region
        $region53: #{tpu_custom_call.1} parent=51 // pred_check
          %p336 = pneg %p53
        $region54: #{tpu_custom_call.1} parent=51 // pred_check_branch
          %338 = sbr.rel (%p336) target = $region56
        $region55: #{tpu_custom_call.1} parent=51 // pred_region
          %p339 = scmp.lt.s32.totalorder %s33, 1
          %s340 = scalar_select %p339, %s33, 1
          %s341 = smul.addr %s340, 8
          %s342 = scalar_lea.vmem %s2, %s341
        $region56: #{tpu_custom_call.1} parent=51 // pred_fallthru
          _
      $region52: #{tpu_custom_call.1} parent=5 // pred_fallthru
        _
      %p343 = scmp.le.s32.totalorder 1, %s33
      %p344 = scmp.lt.s32.totalorder %s33, 3
      %p345 = pnand %p343, %p344
      %p346 = pneg %p345
      // Predicated region
      $region57: #{tpu_custom_call.1} parent=5 // pred_check
        _
      $region58: #{tpu_custom_call.1} parent=5 // pred_check_branch
        %348 = sbr.rel (%p345) target = $region60
      $region59: #{tpu_custom_call.1} parent=5 // pred_region
        %s349 = ssub.s32 %s33, 1
        // Predicated region
        $region61: #{tpu_custom_call.1} parent=59 // pred_check
          %p350 = pneg %p143
        $region62: #{tpu_custom_call.1} parent=59 // pred_check_branch
          %352 = sbr.rel (%p350) target = $region64
        $region63: #{tpu_custom_call.1} parent=59 // pred_region
          %353 = dma.done [#allocation6], 16
        $region64: #{tpu_custom_call.1} parent=59 // pred_fallthru
          _
        // Predicated region
        $region65: #{tpu_custom_call.1} parent=59 // pred_check
          %p354 = pneg %p185
        $region66: #{tpu_custom_call.1} parent=59 // pred_check_branch
          %356 = sbr.rel (%p354) target = $region68
        $region67: #{tpu_custom_call.1} parent=59 // pred_region
          %357 = dma.done [#allocation9], 32
        $region68: #{tpu_custom_call.1} parent=59 // pred_fallthru
          _
        %p358 = scmp.lt.s32.totalorder %s38, 1
        %s359 = scalar_select %p358, %s38, 1
        %s360 = smul.addr %s359, 8
        %s361 = scalar_lea.vmem %s2, %s360
        %p362 = pneg %p59
        %p363 = pneg %p56
        %p364 = pneg %p80
        %p365 = pneg %p77
        %p366 = pneg %p101
        %p367 = pneg %p98
        %p368 = pneg %p122
        %p369 = pneg %p119
        %p370 = pneg %p143
        %p371 = pneg %p140
        %p372 = pneg %p164
        %p373 = pneg %p161
        %p374 = pneg %p185
        %p375 = pneg %p182
        %p376 = pneg %p206
        %p377 = pneg %p203
        %p378 = pneg %p227
        %p379 = pneg %p224
        %p380 = pneg %p248
        %p381 = pneg %p245
        %p382 = pneg %p274
        %p383 = pneg %p271
        %s384 = sand.u32 %s261, 1
        %s385 = scalar_lea.sflag [#allocation7], %s384
        %s386 = sand.u32 %s261, 1
        %s387 = smul.addr %s386, 8
        %s388 = scalar_lea.vmem [#allocation10], %s387
        %p389 = scmp.lt.s32.totalorder %s38, 1
        %s390 = scalar_select %p389, %s38, 1
        %s391 = smul.addr %s390, 8
        %s392 = scalar_lea.vmem %s2, %s391
        %v394 = vld [vmem:[%s392] sm:$0xff]
        %v395 = vlaneseq
        %v396 = vshrl.u32 %v395, 7
        %v397 = vlaneseq
        %v398 = vand.u32 %v397, 127
        %vm399 = vcmp.ge.s32.totalorder %v396, %v398
        %s400 = smul.u32 %s38, 128
        %s401 = sld [smem:[#allocation3 + %s400]]
        %s402 = sld [smem:[#allocation4 + %s400]]
        %v403 = vstv %s401
        %vm404 = vcmp.ge.s32.totalorder %v396, %v403
        %s405 = sadd.s32 %s401, %s402
        %v406 = vstv %s405
        %vm407 = vcmp.lt.s32.totalorder %v398, %v406
        %vm408 = vmand %vm404, %vm407
        %vm409 = vmor %vm399, %vm408
        %v410 = vld [vmem:[%s3] sm:$0x1]
        %v411 = vld [vmem:[%s4] sm:$0xf]
        %v412 = vld [vmem:[%s4 + $0x4] sm:$0xf]
        %v413 = vld [vmem:[%s4 + $0x8] sm:$0xf]
        %v414 = vld [vmem:[%s4 + $0xc] sm:$0xf]
        %v415 = vld [vmem:[%s5] sm:$0xf]
        %v416 = vld [vmem:[%s5 + $0x4] sm:$0xf]
        %v417 = vld [vmem:[%s5 + $0x8] sm:$0xf]
        %v418 = vld [vmem:[%s5 + $0xc] sm:$0xf]
        %v419 = vld [vmem:[#allocation5] sm:$0x1]
        %v420 = vld [vmem:[%s7] sm:$0xff]
        %v421 = vld [vmem:[%s7 + $0x8] sm:$0xff]
        %v422 = vld [vmem:[%s7 + $0x10] sm:$0xff]
        %v423 = vld [vmem:[%s7 + $0x18] sm:$0xff]
        %v424 = vld [vmem:[#allocation8] sm:$0x3]
        %v425 = vld [vmem:[%s9] sm:$0xf]
        %v426 = vld [vmem:[%s9 + $0x4] sm:$0xf]
        %v427 = vld [vmem:[%s9 + $0x8] sm:$0xf]
        %v428 = vld [vmem:[%s9 + $0xc] sm:$0xf]
        %v429 = vld [vmem:[%s9 + $0x10] sm:$0xf]
        %v430 = vld [vmem:[%s9 + $0x14] sm:$0xf]
        %v431 = vld [vmem:[%s9 + $0x18] sm:$0xf]
        %v432 = vld [vmem:[%s9 + $0x1c] sm:$0xf]
        %v433 = vld [vmem:[%s9 + $0x20] sm:$0xf]
        %v434 = vld [vmem:[%s9 + $0x24] sm:$0xf]
        %v435 = vld [vmem:[%s9 + $0x28] sm:$0x7]
        %v436 = vld [vmem:[%s10] sm:$0x1]
        %v437 = vmul.f32 %v394, %v394
        %vm438 = vcmask 261120
        %v439 = vsel %vm438, %v437, 0.0
        %440 = vadd.xlane.f32.xlu0 %v439
        %v441 = vpop.xlane.xlu0 %440
        %v442 = vmax.f32 %v441, 1e-24
        %v443 = vrsqrt.pop %v442
        %v444 = vmul.f32 %v394, %v443
        %v445 = vmul.f32 %v444, 5.656854
        %v446 = vadd.f32 %v410, 1.0
        %v448 = vlaneseq
        %v449 = vshrl.u32 %v448, 7
        %v450 = vsub.s32 0, %v449
        %v451 = vrot.slane %v446, %v450
        %v453 = vmul.f32 %v445, %v451
        %v454 = vpack.c.bf16 %v453, %v453
        %v459 = vunpack.c.l.b16 %v411
        %v460 = vunpack.c.l.b16 %v412
        %v461 = vunpack.c.l.b16 %v413
        %v462 = vunpack.c.l.b16 %v414
        %v463 = vpack.c.b16 %v460, %v459
        %v464 = vpack.c.b16 %v462, %v461
        %v468 = vsel %vm438, %v454, 0
        %470 = vmatprep.subr.bf16.mxu0 0
        %471 = vmatpush1.bf16.msra.mxu0 %v463
        %472 = vmatprep.subr.bf16.mxu0 0
        %473 = vmatpush1.bf16.msra.mxu0 %v464
        %474 = vmatprep.subr.bf16.mxu0 0
        %475 = vmatpush1.bf16.msra.mxu0 0
        %476 = vmatprep.subr.bf16.mxu0 0
        %477 = vmatpush1.bf16.msra.mxu0 0
        %478 = vmatprep.subr.bf16.mxu0 0
        %479 = vmatpush1.bf16.msra.mxu0 0
        %480 = vmatprep.subr.bf16.mxu0 0
        %481 = vmatpush1.bf16.msra.mxu0 0
        %482 = vmatprep.subr.bf16.mxu0 0
        %483 = vmatpush1.bf16.msra.mxu0 0
        %484 = vmatprep.subr.bf16.mxu0 0
        %485 = vmatpush1.bf16.msra.mxu0 0
        %486 = vmatprep.subr.bf16.mxu0 0
        %487 = vmatpush1.bf16.msra.mxu0 0
        %488 = vmatprep.subr.bf16.mxu0 0
        %489 = vmatpush1.bf16.msra.mxu0 0
        %490 = vmatprep.subr.bf16.mxu0 0
        %491 = vmatpush1.bf16.msra.mxu0 0
        %492 = vmatprep.subr.bf16.mxu0 0
        %493 = vmatpush1.bf16.msra.mxu0 0
        %494 = vmatprep.subr.bf16.mxu0 0
        %495 = vmatpush1.bf16.msra.mxu0 0
        %496 = vmatprep.subr.bf16.mxu0 0
        %497 = vmatpush1.bf16.msra.mxu0 0
        %498 = vmatprep.subr.bf16.mxu0 0
        %499 = vmatpush1.bf16.msra.mxu0 0
        %500 = vmatprep.subr.bf16.mxu0 0
        %501 = vmatpush1.bf16.msra.mxu0 0
        %502 = vmatprep.mubr.bf16.mxu0 0
        %503 = vmatmul.mubr.bf16.gmra.mrb[0].mxu0 %v468
        %v504 = vpop.f32.mrb[0].mxu0
        %v505 = vadd.f32 0.0, %v504
        %v506 = vpop.f32.mrb[0].mxu0
        %v507 = vpop.f32.mrb[0].mxu0
        %v508 = vpop.f32.mrb[0].mxu0
        %509 = vdwg.mxu0
        %v510 = vpack.c.bf16 %v505, %v505
        %512 = vrot.lane.b32.xlu0 %v510, 96
        %v513 = vpop.permute.xlu0 %512
        %vm514 = vcmask 130048
        %v516 = vsel %vm514, %v510, 0
        %v519 = vsel %vm514, %v513, 0
        %521 = vmatprep.subr.bf16.mxu0 0
        %522 = vmatpush1.bf16.xpose.msra.mxu0 %v519
        %523 = vmatprep.subr.bf16.mxu0 0
        %524 = vmatpush1.bf16.xpose.msra.mxu0 0
        %525 = vmatprep.subr.bf16.mxu0 0
        %526 = vmatpush1.bf16.xpose.msra.mxu0 0
        %527 = vmatprep.subr.bf16.mxu0 0
        %528 = vmatpush1.bf16.xpose.msra.mxu0 0
        %529 = vmatprep.subr.bf16.mxu0 0
        %530 = vmatpush1.bf16.xpose.msra.mxu0 0
        %531 = vmatprep.subr.bf16.mxu0 0
        %532 = vmatpush1.bf16.xpose.msra.mxu0 0
        %533 = vmatprep.subr.bf16.mxu0 0
        %534 = vmatpush1.bf16.xpose.msra.mxu0 0
        %535 = vmatprep.subr.bf16.mxu0 0
        %536 = vmatpush1.bf16.xpose.msra.mxu0 0
        %537 = vmatprep.subr.bf16.mxu0 0
        %538 = vmatpush1.bf16.xpose.msra.mxu0 0
        %539 = vmatprep.subr.bf16.mxu0 0
        %540 = vmatpush1.bf16.xpose.msra.mxu0 0
        %541 = vmatprep.subr.bf16.mxu0 0
        %542 = vmatpush1.bf16.xpose.msra.mxu0 0
        %543 = vmatprep.subr.bf16.mxu0 0
        %544 = vmatpush1.bf16.xpose.msra.mxu0 0
        %545 = vmatprep.subr.bf16.mxu0 0
        %546 = vmatpush1.bf16.xpose.msra.mxu0 0
        %547 = vmatprep.subr.bf16.mxu0 0
        %548 = vmatpush1.bf16.xpose.msra.mxu0 0
        %549 = vmatprep.subr.bf16.mxu0 0
        %550 = vmatpush1.bf16.xpose.msra.mxu0 0
        %551 = vmatprep.subr.bf16.mxu0 0
        %552 = vmatpush1.bf16.xpose.msra.mxu0 0
        %553 = vmatprep.mubr.bf16.mxu0 0
        %554 = vmatmul.mubr.bf16.gmra.mrb[0].mxu0 %v516
        %v555 = vpop.f32.mrb[0].mxu0
        %v556 = vadd.f32 0.0, %v555
        %v557 = vpop.f32.mrb[0].mxu0
        %v558 = vpop.f32.mrb[0].mxu0
        %v559 = vpop.f32.mrb[0].mxu0
        %560 = vdwg.mxu0
        %v561 = vmul.f32 %v556, 0.005
        %v562 = vtanh.pop %v561
        %v563 = vmul.f32 %v562, 50.0
        %v564 = vsel %vm409, %v563, -3.4028235e+38
        %vm565 = vcmask 64512
        %v566 = vsel %vm565, %v564, -inf
        %567 = vmax.xlane.f32.xlu0 %v566
        %v568 = vpop.xlane.xlu0 %567
        %v569 = vsub.f32 %v564, %v568
        %v570 = vmul.f32 %v569, 1.442695
        %v571 = vpow.pop %v570
        %v572 = vsel %vm565, %v571, 0.0
        %573 = vadd.xlane.f32.xlu0 %v572
        %v574 = vpop.xlane.xlu0 %573
        %v575 = vrcp.pop %v574
        %v576 = vmul.f32 %v571, %v575
        %v577 = vpack.c.bf16 %v576, %v576
        %578 = vrot.lane.b32.xlu0 %v510, 64
        %v579 = vpop.permute.xlu0 %578
        %v581 = vsel %vm565, %v577, 0
        %vm583 = vcmask 1043456
        %v585 = vsel %vm583, %v579, 0
        %587 = vmatprep.subr.bf16.mxu0 0
        %588 = vmatpush1.bf16.msra.mxu0 %v585
        %589 = vmatprep.subr.bf16.mxu0 0
        %590 = vmatpush1.bf16.msra.mxu0 0
        %591 = vmatprep.subr.bf16.mxu0 0
        %592 = vmatpush1.bf16.msra.mxu0 0
        %593 = vmatprep.subr.bf16.mxu0 0
        %594 = vmatpush1.bf16.msra.mxu0 0
        %595 = vmatprep.subr.bf16.mxu0 0
        %596 = vmatpush1.bf16.msra.mxu0 0
        %597 = vmatprep.subr.bf16.mxu0 0
        %598 = vmatpush1.bf16.msra.mxu0 0
        %599 = vmatprep.subr.bf16.mxu0 0
        %600 = vmatpush1.bf16.msra.mxu0 0
        %601 = vmatprep.subr.bf16.mxu0 0
        %602 = vmatpush1.bf16.msra.mxu0 0
        %603 = vmatprep.subr.bf16.mxu0 0
        %604 = vmatpush1.bf16.msra.mxu0 0
        %605 = vmatprep.subr.bf16.mxu0 0
        %606 = vmatpush1.bf16.msra.mxu0 0
        %607 = vmatprep.subr.bf16.mxu0 0
        %608 = vmatpush1.bf16.msra.mxu0 0
        %609 = vmatprep.subr.bf16.mxu0 0
        %610 = vmatpush1.bf16.msra.mxu0 0
        %611 = vmatprep.subr.bf16.mxu0 0
        %612 = vmatpush1.bf16.msra.mxu0 0
        %613 = vmatprep.subr.bf16.mxu0 0
        %614 = vmatpush1.bf16.msra.mxu0 0
        %615 = vmatprep.subr.bf16.mxu0 0
        %616 = vmatpush1.bf16.msra.mxu0 0
        %617 = vmatprep.subr.bf16.mxu0 0
        %618 = vmatpush1.bf16.msra.mxu0 0
        %619 = vmatprep.mubr.bf16.mxu0 0
        %620 = vmatmul.mubr.bf16.gmra.mrb[0].mxu0 %v581
        %v621 = vpop.f32.mrb[0].mxu0
        %v622 = vadd.f32 0.0, %v621
        %v623 = vpop.f32.mrb[0].mxu0
        %v624 = vpop.f32.mrb[0].mxu0
        %v625 = vpop.f32.mrb[0].mxu0
        %626 = vdwg.mxu0
        %627 = vrot.lane.b32.xlu0 %v510, 112
        %v628 = vpop.permute.xlu0 %627
        %629 = vrot.lane.b32.xlu0 %v510, 80
        %v630 = vpop.permute.xlu0 %629
        %v632 = vsel %vm514, %v628, 0
        %v635 = vsel %vm514, %v630, 0
        %637 = vmatprep.subr.bf16.mxu0 0
        %638 = vmatpush1.bf16.xpose.msra.mxu0 %v635
        %639 = vmatprep.subr.bf16.mxu0 0
        %640 = vmatpush1.bf16.xpose.msra.mxu0 0
        %641 = vmatprep.subr.bf16.mxu0 0
        %642 = vmatpush1.bf16.xpose.msra.mxu0 0
        %643 = vmatprep.subr.bf16.mxu0 0
        %644 = vmatpush1.bf16.xpose.msra.mxu0 0
        %645 = vmatprep.subr.bf16.mxu0 0
        %646 = vmatpush1.bf16.xpose.msra.mxu0 0
        %647 = vmatprep.subr.bf16.mxu0 0
        %648 = vmatpush1.bf16.xpose.msra.mxu0 0
        %649 = vmatprep.subr.bf16.mxu0 0
        %650 = vmatpush1.bf16.xpose.msra.mxu0 0
        %651 = vmatprep.subr.bf16.mxu0 0
        %652 = vmatpush1.bf16.xpose.msra.mxu0 0
        %653 = vmatprep.subr.bf16.mxu0 0
        %654 = vmatpush1.bf16.xpose.msra.mxu0 0
        %655 = vmatprep.subr.bf16.mxu0 0
        %656 = vmatpush1.bf16.xpose.msra.mxu0 0
        %657 = vmatprep.subr.bf16.mxu0 0
        %658 = vmatpush1.bf16.xpose.msra.mxu0 0
        %659 = vmatprep.subr.bf16.mxu0 0
        %660 = vmatpush1.bf16.xpose.msra.mxu0 0
        %661 = vmatprep.subr.bf16.mxu0 0
        %662 = vmatpush1.bf16.xpose.msra.mxu0 0
        %663 = vmatprep.subr.bf16.mxu0 0
        %664 = vmatpush1.bf16.xpose.msra.mxu0 0
        %665 = vmatprep.subr.bf16.mxu0 0
        %666 = vmatpush1.bf16.xpose.msra.mxu0 0
        %667 = vmatprep.subr.bf16.mxu0 0
        %668 = vmatpush1.bf16.xpose.msra.mxu0 0
        %669 = vmatprep.mubr.bf16.mxu0 0
        %670 = vmatmul.mubr.bf16.gmra.mrb[0].mxu0 %v632
        %v671 = vpop.f32.mrb[0].mxu0
        %v672 = vadd.f32 0.0, %v671
        %v673 = vpop.f32.mrb[0].mxu0
        %v674 = vpop.f32.mrb[0].mxu0
        %v675 = vpop.f32.mrb[0].mxu0
        %676 = vdwg.mxu0
        %v677 = vmul.f32 %v672, 0.005
        %v678 = vtanh.pop %v677
        %v679 = vmul.f32 %v678, 50.0
        %v680 = vsel %vm409, %v679, -3.4028235e+38
        %v681 = vsel %vm565, %v680, -inf
        %682 = vmax.xlane.f32.xlu0 %v681
        %v683 = vpop.xlane.xlu0 %682
        %v684 = vsub.f32 %v680, %v683
        %v685 = vmul.f32 %v684, 1.442695
        %v686 = vpow.pop %v685
        %v687 = vsel %vm565, %v686, 0.0
        %688 = vadd.xlane.f32.xlu0 %v687
        %v689 = vpop.xlane.xlu0 %688
        %v690 = vrcp.pop %v689
        %v691 = vmul.f32 %v686, %v690
        %v692 = vpack.c.bf16 %v691, %v691
        %693 = vrot.lane.b32.xlu0 %v510, 48
        %v694 = vpop.permute.xlu0 %693
        %v696 = vsel %vm565, %v692, 0
        %v699 = vsel %vm583, %v694, 0
        %701 = vmatprep.subr.bf16.mxu0 0
        %702 = vmatpush1.bf16.msra.mxu0 %v699
        %703 = vmatprep.subr.bf16.mxu0 0
        %704 = vmatpush1.bf16.msra.mxu0 0
        %705 = vmatprep.subr.bf16.mxu0 0
        %706 = vmatpush1.bf16.msra.mxu0 0
        %707 = vmatprep.subr.bf16.mxu0 0
        %708 = vmatpush1.bf16.msra.mxu0 0
        %709 = vmatprep.subr.bf16.mxu0 0
        %710 = vmatpush1.bf16.msra.mxu0 0
        %711 = vmatprep.subr.bf16.mxu0 0
        %712 = vmatpush1.bf16.msra.mxu0 0
        %713 = vmatprep.subr.bf16.mxu0 0
        %714 = vmatpush1.bf16.msra.mxu0 0
        %715 = vmatprep.subr.bf16.mxu0 0
        %716 = vmatpush1.bf16.msra.mxu0 0
        %717 = vmatprep.subr.bf16.mxu0 0
        %718 = vmatpush1.bf16.msra.mxu0 0
        %719 = vmatprep.subr.bf16.mxu0 0
        %720 = vmatpush1.bf16.msra.mxu0 0
        %721 = vmatprep.subr.bf16.mxu0 0
        %722 = vmatpush1.bf16.msra.mxu0 0
        %723 = vmatprep.subr.bf16.mxu0 0
        %724 = vmatpush1.bf16.msra.mxu0 0
        %725 = vmatprep.subr.bf16.mxu0 0
        %726 = vmatpush1.bf16.msra.mxu0 0
        %727 = vmatprep.subr.bf16.mxu0 0
        %728 = vmatpush1.bf16.msra.mxu0 0
        %729 = vmatprep.subr.bf16.mxu0 0
        %730 = vmatpush1.bf16.msra.mxu0 0
        %731 = vmatprep.subr.bf16.mxu0 0
        %732 = vmatpush1.bf16.msra.mxu0 0
        %733 = vmatprep.mubr.bf16.mxu0 0
        %734 = vmatmul.mubr.bf16.gmra.mrb[0].mxu0 %v696
        %v735 = vpop.f32.mrb[0].mxu0
        %v736 = vadd.f32 0.0, %v735
        %v737 = vpop.f32.mrb[0].mxu0
        %v738 = vpop.f32.mrb[0].mxu0
        %v739 = vpop.f32.mrb[0].mxu0
        %740 = vdwg.mxu0
        %742 = vrot.lane.b32.xlu0 %v736, 16
        %v743 = vpop.permute.xlu0 %742
        %v745 = vsel %vm514, %v622, %v743
        %v746 = vpack.c.bf16 %v745, %v745
        %v751 = vunpack.c.l.b16 %v415
        %v752 = vunpack.c.l.b16 %v416
        %v753 = vunpack.c.l.b16 %v417
        %v754 = vunpack.c.l.b16 %v418
        %v755 = vpack.c.b16 %v752, %v751
        %v756 = vpack.c.b16 %v754, %v753
        %v760 = vsel %vm438, %v746, 0
        %762 = vmatprep.subr.bf16.mxu0 0
        %763 = vmatpush1.bf16.msra.mxu0 %v755
        %764 = vmatprep.subr.bf16.mxu0 0
        %765 = vmatpush1.bf16.msra.mxu0 %v756
        %766 = vmatprep.subr.bf16.mxu0 0
        %767 = vmatpush1.bf16.msra.mxu0 0
        %768 = vmatprep.subr.bf16.mxu0 0
        %769 = vmatpush1.bf16.msra.mxu0 0
        %770 = vmatprep.subr.bf16.mxu0 0
        %771 = vmatpush1.bf16.msra.mxu0 0
        %772 = vmatprep.subr.bf16.mxu0 0
        %773 = vmatpush1.bf16.msra.mxu0 0
        %774 = vmatprep.subr.bf16.mxu0 0
        %775 = vmatpush1.bf16.msra.mxu0 0
        %776 = vmatprep.subr.bf16.mxu0 0
        %777 = vmatpush1.bf16.msra.mxu0 0
        %778 = vmatprep.subr.bf16.mxu0 0
        %779 = vmatpush1.bf16.msra.mxu0 0
        %780 = vmatprep.subr.bf16.mxu0 0
        %781 = vmatpush1.bf16.msra.mxu0 0
        %782 = vmatprep.subr.bf16.mxu0 0
        %783 = vmatpush1.bf16.msra.mxu0 0
        %784 = vmatprep.subr.bf16.mxu0 0
        %785 = vmatpush1.bf16.msra.mxu0 0
        %786 = vmatprep.subr.bf16.mxu0 0
        %787 = vmatpush1.bf16.msra.mxu0 0
        %788 = vmatprep.subr.bf16.mxu0 0
        %789 = vmatpush1.bf16.msra.mxu0 0
        %790 = vmatprep.subr.bf16.mxu0 0
        %791 = vmatpush1.bf16.msra.mxu0 0
        %792 = vmatprep.subr.bf16.mxu0 0
        %793 = vmatpush1.bf16.msra.mxu0 0
        %794 = vmatprep.mubr.bf16.mxu0 0
        %795 = vmatmul.mubr.bf16.gmra.mrb[0].mxu0 %v760
        %v796 = vpop.f32.mrb[0].mxu0
        %v797 = vadd.f32 %v394, %v796
        %v798 = vpop.f32.mrb[0].mxu0
        %v799 = vpop.f32.mrb[0].mxu0
        %v800 = vpop.f32.mrb[0].mxu0
        %801 = vdwg.mxu0
        %v802 = vmul.f32 %v797, %v797
        %v803 = vsel %vm438, %v802, 0.0
        %804 = vadd.xlane.f32.xlu0 %v803
        %v805 = vpop.xlane.xlu0 %804
        %v806 = vmax.f32 %v805, 1e-24
        %v807 = vrsqrt.pop %v806
        %v808 = vmul.f32 %v797, %v807
        %v809 = vmul.f32 %v808, 5.656854
        %v810 = vadd.f32 %v419, 1.0
        %v812 = vlaneseq
        %v813 = vshrl.u32 %v812, 7
        %v814 = vsub.s32 0, %v813
        %v815 = vrot.slane %v810, %v814
        %v817 = vmul.f32 %v809, %v815
        %v818 = vpack.c.bf16 %v817, %v817
        %v820 = vlaneseq
        %v821 = vshrl.u32 %v820, 7
        %v822 = vsub.s32 0, %v821
        %v823 = vrot.slane %v424, %v822
        %v824 = vlaneseq
        %v825 = vshrl.u32 %v824, 7
        %v826 = vsub.s32 1, %v825
        %v827 = vrot.slane %v424, %v826
        %v834 = vunpack.c.l.b16 %v420
        %v835 = vunpack.c.h.b16 %v420
        %v836 = vunpack.c.l.b16 %v421
        %v837 = vunpack.c.h.b16 %v421
        %v838 = vunpack.c.l.b16 %v422
        %v839 = vunpack.c.h.b16 %v422
        %v840 = vunpack.c.l.b16 %v423
        %v841 = vunpack.c.h.b16 %v423
        %v842 = vpack.c.b16 %v836, %v834
        %v843 = vpack.c.b16 %v837, %v835
        %v844 = vpack.c.b16 %v840, %v838
        %v845 = vpack.c.b16 %v841, %v839
        %v851 = vsel %vm438, %v818, 0
        %853 = vmatprep.subr.bf16.mxu0 %v843
        %854 = vmatpush1.bf16.msra.mxu0 %v842
        %855 = vmatprep.subr.bf16.mxu0 %v845
        %856 = vmatpush1.bf16.msra.mxu0 %v844
        %857 = vmatprep.subr.bf16.mxu0 0
        %858 = vmatpush1.bf16.msra.mxu0 0
        %859 = vmatprep.subr.bf16.mxu0 0
        %860 = vmatpush1.bf16.msra.mxu0 0
        %861 = vmatprep.subr.bf16.mxu0 0
        %862 = vmatpush1.bf16.msra.mxu0 0
        %863 = vmatprep.subr.bf16.mxu0 0
        %864 = vmatpush1.bf16.msra.mxu0 0
        %865 = vmatprep.subr.bf16.mxu0 0
        %866 = vmatpush1.bf16.msra.mxu0 0
        %867 = vmatprep.subr.bf16.mxu0 0
        %868 = vmatpush1.bf16.msra.mxu0 0
        %869 = vmatprep.subr.bf16.mxu0 0
        %870 = vmatpush1.bf16.msra.mxu0 0
        %871 = vmatprep.subr.bf16.mxu0 0
        %872 = vmatpush1.bf16.msra.mxu0 0
        %873 = vmatprep.subr.bf16.mxu0 0
        %874 = vmatpush1.bf16.msra.mxu0 0
        %875 = vmatprep.subr.bf16.mxu0 0
        %876 = vmatpush1.bf16.msra.mxu0 0
        %877 = vmatprep.subr.bf16.mxu0 0
        %878 = vmatpush1.bf16.msra.mxu0 0
        %879 = vmatprep.subr.bf16.mxu0 0
        %880 = vmatpush1.bf16.msra.mxu0 0
        %881 = vmatprep.subr.bf16.mxu0 0
        %882 = vmatpush1.bf16.msra.mxu0 0
        %883 = vmatprep.subr.bf16.mxu0 0
        %884 = vmatpush1.bf16.msra.mxu0 0
        %885 = vmatprep.mubr.bf16.mxu0 0
        %886 = vmatmul.mubr.bf16.gmra.mrb[0].mxu0 %v851
        %v887 = vpop.f32.mrb[0].mxu0
        %v888 = vadd.f32 %v823, %v887
        %v889 = vpop.f32.mrb[0].mxu0
        %v890 = vadd.f32 %v827, %v889
        %v891 = vpop.f32.mrb[0].mxu0
        %v892 = vpop.f32.mrb[0].mxu0
        %893 = vdwg.mxu0
        %v894 = vmul.f32 %v888, 0.5
        %v895 = vmul.f32 %v890, 0.5
        %v896 = vmul.f32 %v888, 0.70710677
        %v897 = vmul.f32 %v890, 0.70710677
        %v898 = verf.f32.pop %v896
        %v899 = verf.f32.pop %v897
        %v900 = vadd.f32 %v898, 1.0
        %v901 = vadd.f32 %v899, 1.0
        %v902 = vmul.f32 %v894, %v900
        %v903 = vmul.f32 %v895, %v901
        %905 = vrot.lane.b32.xlu0 %v888, 85
        %v906 = vpop.permute.xlu0 %905
        %v908 = vmul.f32 %v902, %v906
        %v909 = vmul.f32 %v903, %v906
        %v910 = vpack.c.bf16 %v908, %v908
        %v911 = vpack.c.bf16 %v909, %v909
        %v913 = vlaneseq
        %v914 = vshrl.u32 %v913, 7
        %v915 = vsub.s32 0, %v914
        %v916 = vrot.slane %v436, %v915
        %920 = vrot.lane.b32.xlu0 %v910, 43
        %v921 = vpop.permute.xlu0 %920
        %922 = vrot.lane.b32.xlu0 %v911, 43
        %v923 = vpop.permute.xlu0 %922
        %vm924 = vcmask 351232
        %v925 = vsel %vm924, %v921, %v923
        %v937 = vunpack.c.l.b16 %v425
        %v938 = vunpack.c.l.b16 %v426
        %v939 = vunpack.c.l.b16 %v427
        %v940 = vunpack.c.l.b16 %v428
        %v941 = vunpack.c.l.b16 %v429
        %v942 = vunpack.c.l.b16 %v430
        %v943 = vunpack.c.l.b16 %v431
        %v944 = vunpack.c.l.b16 %v432
        %v945 = vunpack.c.l.b16 %v433
        %v946 = vunpack.c.l.b16 %v434
        %v947 = vunpack.c.l.b16 %v435
        %v948 = vpack.c.b16 %v938, %v937
        %v949 = vpack.c.b16 %v940, %v939
        %v950 = vpack.c.b16 %v942, %v941
        %v951 = vpack.c.b16 %v944, %v943
        %v952 = vpack.c.b16 %v946, %v945
        %v953 = vpack.c.b16 %v947, %v947
        %vm959 = vcmask 695296
        %v961 = vsel %vm959, %v925, 0
        %vm963 = vcmask 1041408
        %vm964 = vcmask 1042432
        %v965 = vsel %vm963, 4294967295, 65535
        %v966 = vsel %vm964, %v965, 0
        %v968 = vand.u32 %v953, %v966
        %970 = vmatprep.subr.bf16.mxu0 0
        %971 = vmatpush1.bf16.msra.mxu0 %v948
        %972 = vmatprep.subr.bf16.mxu0 0
        %973 = vmatpush1.bf16.msra.mxu0 %v949
        %974 = vmatprep.subr.bf16.mxu0 0
        %975 = vmatpush1.bf16.msra.mxu0 %v950
        %976 = vmatprep.subr.bf16.mxu0 0
        %977 = vmatpush1.bf16.msra.mxu0 %v951
        %978 = vmatprep.subr.bf16.mxu0 0
        %979 = vmatpush1.bf16.msra.mxu0 %v952
        %980 = vmatprep.subr.bf16.mxu0 0
        %981 = vmatpush1.bf16.msra.mxu0 %v968
        %982 = vmatprep.subr.bf16.mxu0 0
        %983 = vmatpush1.bf16.msra.mxu0 0
        %984 = vmatprep.subr.bf16.mxu0 0
        %985 = vmatpush1.bf16.msra.mxu0 0
        %986 = vmatprep.subr.bf16.mxu0 0
        %987 = vmatpush1.bf16.msra.mxu0 0
        %988 = vmatprep.subr.bf16.mxu0 0
        %989 = vmatpush1.bf16.msra.mxu0 0
        %990 = vmatprep.subr.bf16.mxu0 0
        %991 = vmatpush1.bf16.msra.mxu0 0
        %992 = vmatprep.subr.bf16.mxu0 0
        %993 = vmatpush1.bf16.msra.mxu0 0
        %994 = vmatprep.subr.bf16.mxu0 0
        %995 = vmatpush1.bf16.msra.mxu0 0
        %996 = vmatprep.subr.bf16.mxu0 0
        %997 = vmatpush1.bf16.msra.mxu0 0
        %998 = vmatprep.subr.bf16.mxu0 0
        %999 = vmatpush1.bf16.msra.mxu0 0
        %1000 = vmatprep.subr.bf16.mxu0 0
        %1001 = vmatpush1.bf16.msra.mxu0 0
        %1002 = vmatprep.mubr.bf16.mxu0 0
        %1003 = vmatmul.mubr.bf16.gmra.mrb[0].mxu0 %v961
        %v1004 = vpop.f32.mrb[0].mxu0
        %v1005 = vadd.f32 %v916, %v1004
        %v1006 = vpop.f32.mrb[0].mxu0
        %v1007 = vpop.f32.mrb[0].mxu0
        %v1008 = vpop.f32.mrb[0].mxu0
        %1009 = vdwg.mxu0
        %v1010 = vadd.f32 %v1005, %v797
        %1011 = vst.msk [vmem:[%s388] sm:$0xff] %vm438, %v1010
        %s1012 = sand.u32 %s261, 1
        %s1013 = scalar_lea.sflag [#allocation7], %s1012
        %s1014 = sand.u32 %s261, 1
        %s1015 = smul.addr %s1014, 8
        %s1016 = scalar_lea.vmem [#allocation10], %s1015
        // Predicated region
        $region69: #{tpu_custom_call.1} parent=59 // pred_check
          %p1017 = pneg %p271
        $region70: #{tpu_custom_call.1} parent=59 // pred_check_branch
          %1019 = sbr.rel (%p1017) target = $region72
        $region71: #{tpu_custom_call.1} parent=59 // pred_region
          %s1021 = ssub.s32 128, 128
          %1022 = vsyncadd %s1013, %s1021
          %s1023 = smul.addr %s38, 128
          %s1024 = scalar_lea.hbm %s12, %s1023
          %s1026 = sshll.u32 %s1016, 4
          %s1027 = int_to_ptr.vmem [resolvable:$true] %s1026
          %1029 = dma.vmem_to_hbm [thread:$0]  %s1027, 128, %s1024, %s1013
        $region72: #{tpu_custom_call.1} parent=59 // pred_fallthru
          _
      $region60: #{tpu_custom_call.1} parent=5 // pred_fallthru
        _
      %p1030 = scmp.le.s32.totalorder 2, %s33
      // Predicated region
      $region73: #{tpu_custom_call.1} parent=5 // pred_check
        %p1031 = pneg %p1030
      $region74: #{tpu_custom_call.1} parent=5 // pred_check_branch
        %1033 = sbr.rel (%p1031) target = $region76
      $region75: #{tpu_custom_call.1} parent=5 // pred_region
        %s1034 = ssub.s32 %s33, 2
        // Predicated region
        $region77: #{tpu_custom_call.1} parent=75 // pred_check
          %p1035 = pneg %p277
        $region78: #{tpu_custom_call.1} parent=75 // pred_check_branch
          %1037 = sbr.rel (%p1035) target = $region80
        $region79: #{tpu_custom_call.1} parent=75 // pred_region
          %s1038 = sand.u32 %s262, 1
          %s1039 = scalar_lea.sflag [#allocation7], %s1038
          %s1040 = sand.u32 %s262, 1
          %s1041 = smul.addr %s1040, 8
          %s1042 = scalar_lea.vmem [#allocation10], %s1041
          %1043 = dma.done %s1039, 128
        $region80: #{tpu_custom_call.1} parent=75 // pred_fallthru
          _
      $region76: #{tpu_custom_call.1} parent=5 // pred_fallthru
        _
    $region6: #{tpu_custom_call.1} parent=1 // loop_footer
      %s37 = sadd.s32 1, %s33
    $region7: #{tpu_custom_call.1} parent=1 // loop_footer_branch
      %32 = sbr.rel target = $region3
    $region8: #{tpu_custom_call.1} parent=1 // loop_exit
      _
    %1044 = vsyncpa [#allocation6], 1
    %s1045 = scalar_lea.sflag [#allocation6], 1
    %1046 = vsyncpa %s1045, 1
    %1047 = vsyncpa [#allocation9], 1
    %1048 = vsyncpa [#allocation7], 1
    %s1049 = scalar_lea.sflag [#allocation7], 1
    %1050 = vsyncpa %s1049, 1

</llo_original>
